<compile_context>
chip_gen: v7x
topology: tpu7x:2x2x1
jax: 0.10.0
libtpu: 0.0.40
codegen_flags: <defaults>
</compile_context>

<pallas_src>
import functools
import math

import jax
import jax.numpy as jnp
from jax import lax
from jax.experimental import pallas as pl
from jax.experimental.pallas import tpu as pltpu


def _round_up(x, n):
    return ((x + n - 1) // n) * n


def _arcmargin_kernel(x_ref, w_ref, label_ref, out_ref, w_inv_ref, *,
                      s, cos_m, sin_m, th, mm, easy_margin, block_c, matmul_dtype):
    # ---- per-class inverse norms: computed once per class tile (the weight block
    # index only depends on the OUTER grid axis), cached lane-dense in VMEM scratch.
    @pl.when(pl.program_id(1) == 0)
    def _():
        w32 = w_ref[...].astype(jnp.float32)                       # (TC, D)
        ones8 = jnp.ones((8, w32.shape[1]), jnp.float32)
        # Sum of squares per class produced directly as lane-dense rows via the MXU
        # (avoids an XLU sublane->lane relayout of a (TC, 1) column). All 8 rows of
        # the result are identical; we use row 0 when scaling.
        ssq = lax.dot_general(ones8, w32 * w32,
                              dimension_numbers=(((1,), (1,)), ((), ())),
                              preferred_element_type=jnp.float32)   # (8, TC)
        w_inv_ref[...] = lax.rsqrt(jnp.maximum(ssq, 1e-24))

    # ---- per-row inverse norms of x (EUP rsqrt; cheap, TB*D per step).
    x32 = x_ref[...].astype(jnp.float32)                            # (TB, D)
    inv_x = lax.rsqrt(jnp.maximum(
        jnp.sum(x32 * x32, axis=-1, keepdims=True), 1e-24))         # (TB, 1)

    # ---- raw matmul on the MXU; contraction on the last dim of BOTH operands
    # (no .T / no transposed weight tile).  Norm factors scale the result.
    raw = lax.dot_general(x_ref[...].astype(matmul_dtype),
                          w_ref[...].astype(matmul_dtype),
                          dimension_numbers=(((1,), (1,)), ((), ())),
                          preferred_element_type=jnp.float32)       # (TB, TC)
    cosine = raw * inv_x * w_inv_ref[0:1, :]

    # ---- arc-margin elementwise epilogue.
    sine = jnp.sqrt(jnp.clip(1.0 - cosine * cosine, 0.0, 1.0))
    phi = cosine * cos_m - sine * sin_m
    if easy_margin:
        phi = jnp.where(cosine > 0.0, phi, cosine)
    else:
        phi = jnp.where(cosine > th, phi, cosine - mm)

    # one-hot mix as a single select against a globally-offset class iota.
    class_ids = (lax.broadcasted_iota(jnp.int32, cosine.shape, 1)
                 + pl.program_id(0) * block_c)
    sel = class_ids == label_ref[...]          # label (TB, 1) broadcasts over lanes
    out_ref[...] = (jnp.where(sel, phi, cosine) * s).astype(out_ref.dtype)


def arc_margin_product(x, weight, label, *, s=30.0, m=0.5, easy_margin=False,
                       block_b=128, block_c=512, matmul_dtype=jnp.float32):
    """x: (B, in_features) f32, weight: (out_features, in_features) f32,
    label: (B,) int. Returns (B, out_features) f32.

    block_c should be sized for the chip's VMEM (v7x has 64 MiB vs 128 MiB on
    v5e/v6e); defaults are fine for small/medium class counts.  On v6e/v7x pass
    matmul_dtype=jnp.bfloat16 to halve weight HBM traffic and hit the bf16 MXU rate.
    """
    b, d = x.shape
    c, d2 = weight.shape
    assert d == d2

    # TPU-friendly padded shapes: lanes (last dim) multiple of 128, batch tile a
    # multiple of 8 sublanes, class tile a multiple of 128 (lane-dense output).
    dp = _round_up(d, 128)
    tb = min(block_b, _round_up(b, 8))
    tc = min(block_c, _round_up(c, 128))
    bp = _round_up(b, tb)
    cp = _round_up(c, tc)

    x_p = jnp.pad(x, ((0, bp - b), (0, dp - d)))
    w_p = jnp.pad(weight, ((0, cp - c), (0, dp - d)))
    # label stays in a (TB, 1) VMEM block: it is consumed by a vector compare, and
    # vector reads from SMEM don't lower cleanly.
    label_p = jnp.pad(label.astype(jnp.int32), (0, bp - b)).reshape(bp, 1)

    cos_m = math.cos(m)
    sin_m = math.sin(m)
    th = math.cos(math.pi - m)
    mm = math.sin(math.pi - m) * m

    kernel = functools.partial(
        _arcmargin_kernel, s=s, cos_m=cos_m, sin_m=sin_m, th=th, mm=mm,
        easy_margin=easy_margin, block_c=tc, matmul_dtype=matmul_dtype)

    grid = (cp // tc, bp // tb)   # class tiles outer, batch tiles inner

    out_p = pl.pallas_call(
        kernel,
        out_shape=jax.ShapeDtypeStruct((bp, cp), jnp.float32),
        grid_spec=pltpu.PrefetchScalarGridSpec(
            num_scalar_prefetch=0,
            grid=grid,
            in_specs=[
                pl.BlockSpec((tb, dp), lambda ci, bi: (bi, 0)),   # x: batch tile
                pl.BlockSpec((tc, dp), lambda ci, bi: (ci, 0)),   # w: class tile
                pl.BlockSpec((tb, 1), lambda ci, bi: (bi, 0)),    # label: batch tile
            ],
            out_specs=pl.BlockSpec((tb, tc), lambda ci, bi: (bi, ci)),
            scratch_shapes=[pltpu.VMEM((8, tc), jnp.float32)],    # cached 1/||w||
        ),
        compiler_params=pltpu.CompilerParams(
            dimension_semantics=("parallel", "arbitrary")),
    )(x_p, w_p, label_p)

    return out_p[:b, :c]


def _reference(x, weight, label, *, s=30.0, m=0.5, easy_margin=False):
    x_n = x / jnp.maximum(jnp.linalg.norm(x, axis=-1, keepdims=True), 1e-12)
    w_n = weight / jnp.maximum(jnp.linalg.norm(weight, axis=-1, keepdims=True), 1e-12)
    cosine = x_n @ w_n.T
    sine = jnp.sqrt(jnp.clip(1.0 - cosine ** 2, 0.0, 1.0))
    phi = cosine * math.cos(m) - sine * math.sin(m)
    if easy_margin:
        phi = jnp.where(cosine > 0, phi, cosine)
    else:
        phi = jnp.where(cosine > math.cos(math.pi - m), phi,
                        cosine - math.sin(math.pi - m) * m)
    one_hot = jax.nn.one_hot(label, cosine.shape[1], dtype=jnp.float32)
    return (one_hot * phi + (1.0 - one_hot) * cosine) * s


if __name__ == "__main__":
    B, IN_FEATURES, OUT_FEATURES = 8, 32, 16

    key = jax.random.PRNGKey(0)
    kx, kw, kl = jax.random.split(key, 3)

    x = jax.random.normal(kx, (B, IN_FEATURES), dtype=jnp.float32)

    # Xavier/Glorot uniform init for weight (out_features, in_features).
    bound = math.sqrt(6.0 / (IN_FEATURES + OUT_FEATURES))
    weight = jax.random.uniform(kw, (OUT_FEATURES, IN_FEATURES),
                                dtype=jnp.float32, minval=-bound, maxval=bound)

    label = jax.random.randint(kl, (B,), 0, OUT_FEATURES, dtype=jnp.int32)

    ref = _reference(x, weight, label, s=30.0, m=0.5, easy_margin=False)

    # f32 MXU path: tight check against the reference.
    out = arc_margin_product(x, weight, label, s=30.0, m=0.5, easy_margin=False,
                             matmul_dtype=jnp.float32)
    out = jax.block_until_ready(out)
    assert out.shape == (B, OUT_FEATURES)
    assert jnp.allclose(out, ref, atol=1e-4, rtol=1e-4), "f32 mismatch vs reference"

    # bf16 MXU path (the perf-recommended mode on v6e/v7x): raw bf16 operands,
    # f32 accumulation + f32 norm scaling; loose tolerance.
    out_bf16 = arc_margin_product(x, weight, label, s=30.0, m=0.5, easy_margin=False,
                                  matmul_dtype=jnp.bfloat16)
    out_bf16 = jax.block_until_ready(out_bf16)
    assert jnp.allclose(out_bf16, ref, atol=0.5), "bf16 mismatch vs reference"

    print("KERNEL_OK")
</pallas_src>

<mosaic_0001>
module attributes {stable_mosaic.version = 11 : i64} {
  func.func @_arcmargin_kernel(%arg0: i32, %arg1: i32, %arg2: memref<8x128xf32, #tpu.memory_space<vmem>>, %arg3: memref<128x128xf32, #tpu.memory_space<vmem>>, %arg4: memref<8x1xi32, #tpu.memory_space<vmem>>, %arg5: memref<8x128xf32, #tpu.memory_space<vmem>>, %arg6: memref<8x128xf32, #tpu.memory_space<vmem>>) attributes {dimension_semantics = [#tpu.dimension_semantics<parallel>, #tpu.dimension_semantics<arbitrary>], iteration_bounds = array<i64: 1, 1>, scalar_prefetch = 0 : i64, scratch_operands = 1 : i64, tpu.core_type = #tpu.core_type<tc>, window_params = [{transform_indices = @transform_0, window_bounds = array<i64: 8, 128>}, {transform_indices = @transform_1, window_bounds = array<i64: 128, 128>}, {transform_indices = @transform_2, window_bounds = array<i64: 8, 1>}, {transform_indices = @transform_3, window_bounds = array<i64: 8, 128>}]} {
    %c0_i32 = arith.constant 0 : i32
    %0 = arith.cmpi eq, %arg1, %c0_i32 : i32
    %1 = arith.extui %0 : i1 to i32
    %c0_i32_0 = arith.constant 0 : i32
    %2 = arith.cmpi ne, %1, %c0_i32_0 : i32
    scf.if %2 {
      %c0_22 = arith.constant 0 : index
      %c0_23 = arith.constant 0 : index
      %47 = vector.load %arg3[%c0_22, %c0_23] : memref<128x128xf32, #tpu.memory_space<vmem>>, vector<128x128xf32>
      %cst_24 = arith.constant 1.000000e+00 : f32
      %48 = vector.broadcast %cst_24 : f32 to vector<8x128xf32>
      %49 = arith.mulf %47, %47 : vector<128x128xf32>
      %cst_25 = arith.constant dense<0.000000e+00> : vector<8x128xf32>
      %50 = tpu.matmul %48, %49, %cst_25 {dimension_numbers = #tpu.dot_dimension_numbers<[1], [1], [0], [0], [0, 0, 1, 0], [], []>} : vector<8x128xf32>, vector<128x128xf32>, vector<8x128xf32> -> vector<8x128xf32>
      %cst_26 = arith.constant 1.000000e-24 : f32
      %51 = vector.broadcast %cst_26 : f32 to vector<8x128xf32>
      %52 = arith.maximumf %50, %51 : vector<8x128xf32>
      %53 = math.rsqrt %52 : vector<8x128xf32>
      %c0_27 = arith.constant 0 : index
      %c0_28 = arith.constant 0 : index
      %54 = vector.load %arg6[%c0_27, %c0_28] : memref<8x128xf32, #tpu.memory_space<vmem>>, vector<8x128xf32>
      tpu.vector_store %arg6[%c0_27, %c0_28], %53 {strides = array<i32>} : memref<8x128xf32, #tpu.memory_space<vmem>>, vector<8x128xf32>,
    } else {
    }
    %c0 = arith.constant 0 : index
    %c0_1 = arith.constant 0 : index
    %3 = vector.load %arg2[%c0, %c0_1] : memref<8x128xf32, #tpu.memory_space<vmem>>, vector<8x128xf32>
    %4 = arith.mulf %3, %3 : vector<8x128xf32>
    %cst = arith.constant dense<0.000000e+00> : vector<8xf32>
    %5 = vector.multi_reduction <add>, %4, %cst [1] : vector<8x128xf32> to vector<8xf32>
    %6 = vector.shape_cast %5 : vector<8xf32> to vector<8x1xf32>
    %cst_2 = arith.constant 1.000000e-24 : f32
    %7 = vector.broadcast %cst_2 : f32 to vector<8x1xf32>
    %8 = arith.maximumf %6, %7 : vector<8x1xf32>
    %9 = math.rsqrt %8 : vector<8x1xf32>
    %c0_3 = arith.constant 0 : index
    %c0_4 = arith.constant 0 : index
    %10 = vector.load %arg2[%c0_3, %c0_4] : memref<8x128xf32, #tpu.memory_space<vmem>>, vector<8x128xf32>
    %c0_5 = arith.constant 0 : index
    %c0_6 = arith.constant 0 : index
    %11 = vector.load %arg3[%c0_5, %c0_6] : memref<128x128xf32, #tpu.memory_space<vmem>>, vector<128x128xf32>
    %cst_7 = arith.constant dense<0.000000e+00> : vector<8x128xf32>
    %12 = tpu.matmul %10, %11, %cst_7 {dimension_numbers = #tpu.dot_dimension_numbers<[1], [1], [0], [0], [0, 0, 1, 0], [], []>} : vector<8x128xf32>, vector<128x128xf32>, vector<8x128xf32> -> vector<8x128xf32>
    %13 = vector.broadcast %9 : vector<8x1xf32> to vector<8x128xf32>
    %14 = arith.mulf %12, %13 : vector<8x128xf32>
    %c0_8 = arith.constant 0 : index
    %c0_9 = arith.constant 0 : index
    %15 = vector.load %arg6[%c0_8, %c0_9] : memref<8x128xf32, #tpu.memory_space<vmem>>, vector<1x128xf32>
    %16 = vector.broadcast %15 : vector<1x128xf32> to vector<8x128xf32>
    %17 = arith.mulf %14, %16 : vector<8x128xf32>
    %18 = arith.mulf %17, %17 : vector<8x128xf32>
    %cst_10 = arith.constant 1.000000e+00 : f32
    %19 = vector.broadcast %cst_10 : f32 to vector<8x128xf32>
    %20 = arith.subf %19, %18 : vector<8x128xf32>
    %cst_11 = arith.constant 0.000000e+00 : f32
    %cst_12 = arith.constant 1.000000e+00 : f32
    %21 = vector.broadcast %cst_11 : f32 to vector<8x128xf32>
    %22 = arith.maximumf %21, %20 : vector<8x128xf32>
    %23 = vector.broadcast %cst_12 : f32 to vector<8x128xf32>
    %24 = arith.minimumf %23, %22 : vector<8x128xf32>
    %25 = math.sqrt %24 : vector<8x128xf32>
    %cst_13 = arith.constant 0.87758255 : f32
    %26 = vector.broadcast %cst_13 : f32 to vector<8x128xf32>
    %27 = arith.mulf %17, %26 : vector<8x128xf32>
    %cst_14 = arith.constant 0.47942555 : f32
    %28 = vector.broadcast %cst_14 : f32 to vector<8x128xf32>
    %29 = arith.mulf %25, %28 : vector<8x128xf32>
    %30 = arith.subf %27, %29 : vector<8x128xf32>
    %cst_15 = arith.constant -0.87758255 : f32
    %31 = vector.broadcast %cst_15 : f32 to vector<8x128xf32>
    %32 = arith.cmpf ogt, %17, %31 : vector<8x128xf32>
    %cst_16 = arith.constant 0.239712775 : f32
    %33 = vector.broadcast %cst_16 : f32 to vector<8x128xf32>
    %34 = arith.subf %17, %33 : vector<8x128xf32>
    %35 = arith.select %32, %30, %34 : vector<8x128xi1>, vector<8x128xf32>
    %36 = tpu.iota {dimensions = array<i32: 1>} : vector<8x128xi32>
    %c128_i32 = arith.constant 128 : i32
    %37 = arith.muli %arg0, %c128_i32 : i32
    %38 = vector.broadcast %37 : i32 to vector<8x128xi32>
    %39 = arith.addi %36, %38 : vector<8x128xi32>
    %c0_17 = arith.constant 0 : index
    %c0_18 = arith.constant 0 : index
    %40 = vector.load %arg4[%c0_17, %c0_18] : memref<8x1xi32, #tpu.memory_space<vmem>>, vector<8x1xi32>
    %41 = vector.broadcast %40 : vector<8x1xi32> to vector<8x128xi32>
    %42 = arith.cmpi eq, %39, %41 : vector<8x128xi32>
    %43 = arith.select %42, %35, %17 : vector<8x128xi1>, vector<8x128xf32>
    %cst_19 = arith.constant 3.000000e+01 : f32
    %44 = vector.broadcast %cst_19 : f32 to vector<8x128xf32>
    %45 = arith.mulf %43, %44 : vector<8x128xf32>
    %c0_20 = arith.constant 0 : index
    %c0_21 = arith.constant 0 : index
    %46 = vector.load %arg5[%c0_20, %c0_21] : memref<8x128xf32, #tpu.memory_space<vmem>>, vector<8x128xf32>
    tpu.vector_store %arg5[%c0_20, %c0_21], %45 {strides = array<i32>} : memref<8x128xf32, #tpu.memory_space<vmem>>, vector<8x128xf32>,
    return
  }
  func.func @transform_0(%arg0: i32, %arg1: i32) -> (i32, i32) {
    %c0_i32 = arith.constant 0 : i32
    %c0_i32_0 = arith.constant 0 : i32
    return %arg1, %c0_i32 : i32, i32
  }
  func.func @transform_1(%arg0: i32, %arg1: i32) -> (i32, i32) {
    %c0_i32 = arith.constant 0 : i32
    %c0_i32_0 = arith.constant 0 : i32
    return %arg0, %c0_i32 : i32, i32
  }
  func.func @transform_2(%arg0: i32, %arg1: i32) -> (i32, i32) {
    %c0_i32 = arith.constant 0 : i32
    %c0_i32_0 = arith.constant 0 : i32
    return %arg1, %c0_i32 : i32, i32
  }
  func.func @transform_3(%arg0: i32, %arg1: i32) -> (i32, i32) {
    %c0_i32 = arith.constant 0 : i32
    return %arg1, %arg0 : i32, i32
  }
}

</mosaic_0001>

<llo_original>
// kernel: tpu_custom_call.1
$region0: #{tpu_custom_call.1}
  #allocation0 [shape = 'u32[]', space=smem, size = 0x4, offset = 0x4, fixed_abs, tag = 'smem constant byte address 0x4 - core index']
  #allocation1 [shape = 'u32[144,128]{1,0:T(1,128)}', space=vmem, size = 0x12000, scoped, tag = 'internal scratch']
  #allocation2 [shape = 'f32[8,128]{1,0:T(8,128)}', space=vmem, size = 0x1000, scoped, tag = 'scratch operand']
  %s0 = inlined_call_operand.vmem [shape: f32[8,128], index: 0, kind: input, shape index: {}]
  %s1 = inlined_call_operand.hbm [shape: f32[128,128], index: 1, kind: input, shape index: {}]
  %s2 = inlined_call_operand.vmem [shape: s32[8,1], index: 2, kind: input, shape index: {}]
  %s3 = inlined_call_operand.hbm [shape: f32[8,128], index: 3, kind: output, shape index: {}]
  %s4 = sld [smem:[#allocation0]]
  $region30: #{tpu_custom_call.1} parent=0
    _
  %s6 = ssub.s32 1, %s4
  %s7 = scalar_select 0, %s6, %s4
  $region1: #{tpu_custom_call.1} parent=0
    #allocation3 [shape = 'u8[65536]{0}', space=vmem, size = 0x10000, scoped, tag = 'input window, operand 1, single buffered']
    #allocation4 [shape = 's32[1]{0}', space=sflag, size = 0x4, scoped, tag = 'scoped memory for tpu_custom_call.1']
    #allocation5 [shape = 's32[1]{0}', space=sflag, size = 0x4, scoped, tag = 'scoped memory for tpu_custom_call.1']
    #allocation6 [shape = 'u8[4096]{0}', space=vmem, size = 0x1000, scoped, tag = 'output window, operand 0, single buffered']
    %8 = vsyncpa [#allocation4], 0
    %9 = vsyncpa [#allocation5], 0
    // Predicated region
    $region2: #{tpu_custom_call.1} parent=1 // pred_check
      _
    $region3: #{tpu_custom_call.1} parent=1 // pred_check_branch
      %11 = sbr.rel (0) target = $region5
    $region4: #{tpu_custom_call.1} parent=1 // pred_region
      _
    $region5: #{tpu_custom_call.1} parent=1 // pred_fallthru
      _
    // Predicated region
    $region6: #{tpu_custom_call.1} parent=1 // pred_check
      _
    $region7: #{tpu_custom_call.1} parent=1 // pred_check_branch
      %13 = sbr.rel (0) target = $region9
    $region8: #{tpu_custom_call.1} parent=1 // pred_region
      %s15 = ssub.s32 2048, 2048
      %16 = vsyncadd [#allocation4], %s15
      %s17 = sshll.u32 [#allocation3], 4
      %s18 = int_to_ptr.vmem [resolvable:$true] %s17
      %23 = dma.hbm_to_vmem [thread:$0]  %s1, 2048, %s18, [#allocation4], 128, 128, 8
    $region9: #{tpu_custom_call.1} parent=1 // pred_fallthru
      _
    // Predicated region
    $region10: #{tpu_custom_call.1} parent=1 // pred_check
      _
    $region11: #{tpu_custom_call.1} parent=1 // pred_check_branch
      %25 = sbr.rel (0) target = $region13
    $region12: #{tpu_custom_call.1} parent=1 // pred_region
      _
    $region13: #{tpu_custom_call.1} parent=1 // pred_fallthru
      _
    // Predicated region
    $region14: #{tpu_custom_call.1} parent=1 // pred_check
      _
    $region15: #{tpu_custom_call.1} parent=1 // pred_check_branch
      %27 = sbr.rel (0) target = $region17
    $region16: #{tpu_custom_call.1} parent=1 // pred_region
      %28 = dma.done [#allocation4], 2048
    $region17: #{tpu_custom_call.1} parent=1 // pred_fallthru
      _
    %p29 = scmp.eq.s32.totalorder 0, 0
    // Predicated region
    $region18: #{tpu_custom_call.1} parent=1 // pred_check
      %p30 = pneg %p29
    $region19: #{tpu_custom_call.1} parent=1 // pred_check_branch
      %32 = sbr.rel (%p30) target = $region21
    $region20: #{tpu_custom_call.1} parent=1 // pred_region
      %v33 = vld [vmem:[#allocation3] sm:$0xff]
      %v34 = vld [vmem:[#allocation3 + $0x8] sm:$0xff]
      %v35 = vld [vmem:[#allocation3 + $0x10] sm:$0xff]
      %v36 = vld [vmem:[#allocation3 + $0x18] sm:$0xff]
      %v37 = vld [vmem:[#allocation3 + $0x20] sm:$0xff]
      %v38 = vld [vmem:[#allocation3 + $0x28] sm:$0xff]
      %v39 = vld [vmem:[#allocation3 + $0x30] sm:$0xff]
      %v40 = vld [vmem:[#allocation3 + $0x38] sm:$0xff]
      %v41 = vld [vmem:[#allocation3 + $0x40] sm:$0xff]
      %v42 = vld [vmem:[#allocation3 + $0x48] sm:$0xff]
      %v43 = vld [vmem:[#allocation3 + $0x50] sm:$0xff]
      %v44 = vld [vmem:[#allocation3 + $0x58] sm:$0xff]
      %v45 = vld [vmem:[#allocation3 + $0x60] sm:$0xff]
      %v46 = vld [vmem:[#allocation3 + $0x68] sm:$0xff]
      %v47 = vld [vmem:[#allocation3 + $0x70] sm:$0xff]
      %v48 = vld [vmem:[#allocation3 + $0x78] sm:$0xff]
      %v49 = vmul.f32 %v33, %v33
      %v50 = vmul.f32 %v34, %v34
      %v51 = vmul.f32 %v35, %v35
      %v52 = vmul.f32 %v36, %v36
      %v53 = vmul.f32 %v37, %v37
      %v54 = vmul.f32 %v38, %v38
      %v55 = vmul.f32 %v39, %v39
      %v56 = vmul.f32 %v40, %v40
      %v57 = vmul.f32 %v41, %v41
      %v58 = vmul.f32 %v42, %v42
      %v59 = vmul.f32 %v43, %v43
      %v60 = vmul.f32 %v44, %v44
      %v61 = vmul.f32 %v45, %v45
      %v62 = vmul.f32 %v46, %v46
      %v63 = vmul.f32 %v47, %v47
      %v64 = vmul.f32 %v48, %v48
      %65 = vmatprep.subr.mxu0 0.0
      %66 = vmatpush1.xpose.msra.mxu0 %v49
      %67 = vmatprep.subr.mxu0 0.0
      %68 = vmatpush1.xpose.msra.mxu0 %v50
      %69 = vmatprep.subr.mxu0 0.0
      %70 = vmatpush1.xpose.msra.mxu0 %v51
      %71 = vmatprep.subr.mxu0 0.0
      %72 = vmatpush1.xpose.msra.mxu0 %v52
      %73 = vmatprep.subr.mxu0 0.0
      %74 = vmatpush1.xpose.msra.mxu0 %v53
      %75 = vmatprep.subr.mxu0 0.0
      %76 = vmatpush1.xpose.msra.mxu0 %v54
      %77 = vmatprep.subr.mxu0 0.0
      %78 = vmatpush1.xpose.msra.mxu0 %v55
      %79 = vmatprep.subr.mxu0 0.0
      %80 = vmatpush1.xpose.msra.mxu0 %v56
      %81 = vmatprep.subr.mxu0 0.0
      %82 = vmatpush1.xpose.msra.mxu0 %v57
      %83 = vmatprep.subr.mxu0 0.0
      %84 = vmatpush1.xpose.msra.mxu0 %v58
      %85 = vmatprep.subr.mxu0 0.0
      %86 = vmatpush1.xpose.msra.mxu0 %v59
      %87 = vmatprep.subr.mxu0 0.0
      %88 = vmatpush1.xpose.msra.mxu0 %v60
      %89 = vmatprep.subr.mxu0 0.0
      %90 = vmatpush1.xpose.msra.mxu0 %v61
      %91 = vmatprep.subr.mxu0 0.0
      %92 = vmatpush1.xpose.msra.mxu0 %v62
      %93 = vmatprep.subr.mxu0 0.0
      %94 = vmatpush1.xpose.msra.mxu0 %v63
      %95 = vmatprep.subr.mxu0 0.0
      %96 = vmatpush1.xpose.msra.mxu0 %v64
      %97 = vmatprep.subr.mxu0 0.0
      %98 = vmatpush1.xpose.msra.mxu0 0.0
      %99 = vmatprep.subr.mxu0 0.0
      %100 = vmatpush1.xpose.msra.mxu0 0.0
      %101 = vmatprep.subr.mxu0 0.0
      %102 = vmatpush1.xpose.msra.mxu0 0.0
      %103 = vmatprep.subr.mxu0 0.0
      %104 = vmatpush1.xpose.msra.mxu0 0.0
      %105 = vmatprep.subr.mxu0 0.0
      %106 = vmatpush1.xpose.msra.mxu0 0.0
      %107 = vmatprep.subr.mxu0 0.0
      %108 = vmatpush1.xpose.msra.mxu0 0.0
      %109 = vmatprep.subr.mxu0 0.0
      %110 = vmatpush1.xpose.msra.mxu0 0.0
      %111 = vmatprep.subr.mxu0 0.0
      %112 = vmatpush1.xpose.msra.mxu0 0.0
      %113 = vmatprep.subr.mxu0 0.0
      %114 = vmatpush1.xpose.msra.mxu0 0.0
      %115 = vmatprep.subr.mxu0 0.0
      %116 = vmatpush1.xpose.msra.mxu0 0.0
      %117 = vmatprep.subr.mxu0 0.0
      %118 = vmatpush1.xpose.msra.mxu0 0.0
      %119 = vmatprep.subr.mxu0 0.0
      %120 = vmatpush1.xpose.msra.mxu0 0.0
      %121 = vmatprep.subr.mxu0 0.0
      %122 = vmatpush1.xpose.msra.mxu0 0.0
      %123 = vmatprep.subr.mxu0 0.0
      %124 = vmatpush1.xpose.msra.mxu0 0.0
      %125 = vmatprep.subr.mxu0 0.0
      %126 = vmatpush1.xpose.msra.mxu0 0.0
      %127 = vmatprep.subr.mxu0 0.0
      %128 = vmatpush1.xpose.msra.mxu0 0.0
      %129 = vmatprep.mubr.f32.mxu0 0.0
      %130 = vmatmul.mubr.f32.gmra.mrb[0].mxu0 1.0
      %v131 = vpop.f32.mrb[0].mxu0
      %v132 = vadd.f32 0.0, %v131
      %v133 = vpop.f32.mrb[0].mxu0
      %134 = vdwg.mxu0
      %v135 = vmax.f32 %v132, 1e-24
      %v136 = vrsqrt.pop %v135
      %137 = vst [vmem:[#allocation2] sm:$0xff] %v136
    $region21: #{tpu_custom_call.1} parent=1 // pred_fallthru
      _
    %v138 = vld [vmem:[%s0] sm:$0xff]
    %v139 = vmul.f32 %v138, %v138
    %140 = vadd.xlane.f32.xlu0 %v139
    %v141 = vpop.xlane.xlu0 %140
    %v142 = vmax.f32 %v141, 1e-24
    %v143 = vrsqrt.pop %v142
    %v144 = vld [vmem:[#allocation3] sm:$0xff]
    %v145 = vld [vmem:[#allocation3 + $0x8] sm:$0xff]
    %v146 = vld [vmem:[#allocation3 + $0x10] sm:$0xff]
    %v147 = vld [vmem:[#allocation3 + $0x18] sm:$0xff]
    %v148 = vld [vmem:[#allocation3 + $0x20] sm:$0xff]
    %v149 = vld [vmem:[#allocation3 + $0x28] sm:$0xff]
    %v150 = vld [vmem:[#allocation3 + $0x30] sm:$0xff]
    %v151 = vld [vmem:[#allocation3 + $0x38] sm:$0xff]
    %v152 = vld [vmem:[#allocation3 + $0x40] sm:$0xff]
    %v153 = vld [vmem:[#allocation3 + $0x48] sm:$0xff]
    %v154 = vld [vmem:[#allocation3 + $0x50] sm:$0xff]
    %v155 = vld [vmem:[#allocation3 + $0x58] sm:$0xff]
    %v156 = vld [vmem:[#allocation3 + $0x60] sm:$0xff]
    %v157 = vld [vmem:[#allocation3 + $0x68] sm:$0xff]
    %v158 = vld [vmem:[#allocation3 + $0x70] sm:$0xff]
    %v159 = vld [vmem:[#allocation3 + $0x78] sm:$0xff]
    %160 = vmatprep.subr.mxu0 0.0
    %161 = vmatpush1.xpose.msra.mxu0 %v144
    %162 = vmatprep.subr.mxu0 0.0
    %163 = vmatpush1.xpose.msra.mxu0 %v145
    %164 = vmatprep.subr.mxu0 0.0
    %165 = vmatpush1.xpose.msra.mxu0 %v146
    %166 = vmatprep.subr.mxu0 0.0
    %167 = vmatpush1.xpose.msra.mxu0 %v147
    %168 = vmatprep.subr.mxu0 0.0
    %169 = vmatpush1.xpose.msra.mxu0 %v148
    %170 = vmatprep.subr.mxu0 0.0
    %171 = vmatpush1.xpose.msra.mxu0 %v149
    %172 = vmatprep.subr.mxu0 0.0
    %173 = vmatpush1.xpose.msra.mxu0 %v150
    %174 = vmatprep.subr.mxu0 0.0
    %175 = vmatpush1.xpose.msra.mxu0 %v151
    %176 = vmatprep.subr.mxu0 0.0
    %177 = vmatpush1.xpose.msra.mxu0 %v152
    %178 = vmatprep.subr.mxu0 0.0
    %179 = vmatpush1.xpose.msra.mxu0 %v153
    %180 = vmatprep.subr.mxu0 0.0
    %181 = vmatpush1.xpose.msra.mxu0 %v154
    %182 = vmatprep.subr.mxu0 0.0
    %183 = vmatpush1.xpose.msra.mxu0 %v155
    %184 = vmatprep.subr.mxu0 0.0
    %185 = vmatpush1.xpose.msra.mxu0 %v156
    %186 = vmatprep.subr.mxu0 0.0
    %187 = vmatpush1.xpose.msra.mxu0 %v157
    %188 = vmatprep.subr.mxu0 0.0
    %189 = vmatpush1.xpose.msra.mxu0 %v158
    %190 = vmatprep.subr.mxu0 0.0
    %191 = vmatpush1.xpose.msra.mxu0 %v159
    %192 = vmatprep.subr.mxu0 0.0
    %193 = vmatpush1.xpose.msra.mxu0 0.0
    %194 = vmatprep.subr.mxu0 0.0
    %195 = vmatpush1.xpose.msra.mxu0 0.0
    %196 = vmatprep.subr.mxu0 0.0
    %197 = vmatpush1.xpose.msra.mxu0 0.0
    %198 = vmatprep.subr.mxu0 0.0
    %199 = vmatpush1.xpose.msra.mxu0 0.0
    %200 = vmatprep.subr.mxu0 0.0
    %201 = vmatpush1.xpose.msra.mxu0 0.0
    %202 = vmatprep.subr.mxu0 0.0
    %203 = vmatpush1.xpose.msra.mxu0 0.0
    %204 = vmatprep.subr.mxu0 0.0
    %205 = vmatpush1.xpose.msra.mxu0 0.0
    %206 = vmatprep.subr.mxu0 0.0
    %207 = vmatpush1.xpose.msra.mxu0 0.0
    %208 = vmatprep.subr.mxu0 0.0
    %209 = vmatpush1.xpose.msra.mxu0 0.0
    %210 = vmatprep.subr.mxu0 0.0
    %211 = vmatpush1.xpose.msra.mxu0 0.0
    %212 = vmatprep.subr.mxu0 0.0
    %213 = vmatpush1.xpose.msra.mxu0 0.0
    %214 = vmatprep.subr.mxu0 0.0
    %215 = vmatpush1.xpose.msra.mxu0 0.0
    %216 = vmatprep.subr.mxu0 0.0
    %217 = vmatpush1.xpose.msra.mxu0 0.0
    %218 = vmatprep.subr.mxu0 0.0
    %219 = vmatpush1.xpose.msra.mxu0 0.0
    %220 = vmatprep.subr.mxu0 0.0
    %221 = vmatpush1.xpose.msra.mxu0 0.0
    %222 = vmatprep.subr.mxu0 0.0
    %223 = vmatpush1.xpose.msra.mxu0 0.0
    %224 = vmatprep.mubr.f32.mxu0 0.0
    %225 = vmatmul.mubr.f32.gmra.mrb[0].mxu0 %v138
    %v226 = vpop.f32.mrb[0].mxu0
    %v227 = vadd.f32 0.0, %v226
    %v228 = vpop.f32.mrb[0].mxu0
    %229 = vdwg.mxu0
    %v230 = vmul.f32 %v227, %v143
    %v231 = vld [vmem:[#allocation2] sm:$0x1]
    %v232 = vlaneseq
    %v233 = vshrl.u32 %v232, 7
    %v234 = vsub.s32 0, %v233
    %v235 = vrot.slane %v231, %v234
    %v236 = vmul.f32 %v230, %v235
    %v237 = vmul.f32 %v236, %v236
    %v238 = vsub.f32 1.0, %v237
    %v239 = vmax.f32 %v238, 0.0
    %v240 = vmin.f32 %v239, 1.0
    %v241 = vrsqrt.pop %v240
    %v242 = vmul.f32 %v240, %v241
    %vm243 = vcmp.eq.f32.partialorder %v240, inf
    %v244 = vsel %vm243, %v240, %v242
    %vm245 = vcmp.eq.f32.partialorder %v240, 0.0
    %v246 = vand.u32 %v240, 2147483648
    %v247 = vsel %vm245, %v246, %v244
    %v248 = vmul.f32 %v236, 0.87758255
    %v249 = vmul.f32 %v247, 0.47942555
    %v250 = vsub.f32 %v248, %v249
    %vm251 = vcmp.gt.f32.partialorder %v236, -0.87758255
    %v252 = vsub.f32 %v236, 0.23971277
    %v253 = vsel %vm251, %v250, %v252
    %v254 = vlaneseq
    %v255 = vand.u32 %v254, 127
    %s256 = smul.u32 0, 128
    %v257 = vstv %s256
    %v258 = vadd.s32 %v255, %v257
    %v259 = vld [vmem:[%s2] sm:$0xff]
    %260 = vset.pattern.permute.xlu0 0
    %261 = vperm.xlu0 %260, %v259
    %v262 = vpop.permute.xlu0 %261
    %vm263 = vcmp.eq.s32.totalorder %v258, %v262
    %v264 = vsel %vm263, %v253, %v236
    %v265 = vmul.f32 %v264, 30.0
    %266 = vst [vmem:[#allocation6] sm:$0xff] %v265
    // Predicated region
    $region22: #{tpu_custom_call.1} parent=1 // pred_check
      _
    $region23: #{tpu_custom_call.1} parent=1 // pred_check_branch
      %268 = sbr.rel (0) target = $region25
    $region24: #{tpu_custom_call.1} parent=1 // pred_region
      %s270 = ssub.s32 128, 128
      %271 = vsyncadd [#allocation5], %s270
      %s273 = sshll.u32 [#allocation6], 4
      %s274 = int_to_ptr.vmem [resolvable:$true] %s273
      %276 = dma.vmem_to_hbm [thread:$0]  %s274, 128, %s3, [#allocation5]
    $region25: #{tpu_custom_call.1} parent=1 // pred_fallthru
      _
    // Predicated region
    $region26: #{tpu_custom_call.1} parent=1 // pred_check
      _
    $region27: #{tpu_custom_call.1} parent=1 // pred_check_branch
      %278 = sbr.rel (0) target = $region29
    $region28: #{tpu_custom_call.1} parent=1 // pred_region
      %279 = dma.done [#allocation5], 128
    $region29: #{tpu_custom_call.1} parent=1 // pred_fallthru
      _
    %280 = vsyncpa [#allocation4], 1
    %281 = vsyncpa [#allocation5], 1

</llo_original>
